<compile_context>
chip_gen: v6e
topology: v6e:2x2x1
jax: 0.10.0
libtpu: 0.0.40
codegen_flags: <defaults>
</compile_context>

<pallas_src>
import math

import jax
import jax.numpy as jnp
from jax.experimental import pallas as pl
from jax.experimental.pallas import tpu as pltpu


# ----------------------------- kernels -------------------------------------

def _mm_acc_bias_kernel(x_ref, w_ref, b_ref, o_ref, acc_ref):
    # x_ref: (tm, tk), w_ref: (tk, tn), b_ref: (1, tn), o_ref/acc_ref: (tm, tn)
    k = pl.program_id(2)

    @pl.when(k == 0)
    def _():
        # Fold the bias into the accumulator init (no epilogue add).
        acc_ref[...] = jnp.broadcast_to(
            b_ref[...].astype(jnp.float32), acc_ref.shape)

    acc_ref[...] += jnp.dot(x_ref[...], w_ref[...],
                            preferred_element_type=jnp.float32)

    @pl.when(k == pl.num_programs(2) - 1)
    def _():
        o_ref[...] = acc_ref[...].astype(o_ref.dtype)


def _mm_acc_nobias_kernel(x_ref, w_ref, o_ref, acc_ref):
    k = pl.program_id(2)

    @pl.when(k == 0)
    def _():
        acc_ref[...] = jnp.zeros_like(acc_ref)

    acc_ref[...] += jnp.dot(x_ref[...], w_ref[...],
                            preferred_element_type=jnp.float32)

    @pl.when(k == pl.num_programs(2) - 1)
    def _():
        o_ref[...] = acc_ref[...].astype(o_ref.dtype)


def _mm_single_bias_kernel(x_ref, w_ref, b_ref, o_ref):
    # Single K step: write directly, no accumulator scratch.
    acc = jnp.dot(x_ref[...], w_ref[...], preferred_element_type=jnp.float32)
    o_ref[...] = (acc + b_ref[...].astype(jnp.float32)).astype(o_ref.dtype)


def _mm_single_nobias_kernel(x_ref, w_ref, o_ref):
    o_ref[...] = jnp.dot(x_ref[...], w_ref[...],
                         preferred_element_type=jnp.float32).astype(o_ref.dtype)


# ----------------------------- helpers --------------------------------------

def _cdiv(a, b):
    return -(-a // b)


def _round_up(x, m):
    return ((x + m - 1) // m) * m


def _pick_tile(dim, target, align):
    """Biggest useful tile: the (align-padded) full dim if it fits in `target`,
    else `target` rounded down to a multiple of `align`.  Never degenerate,
    always `align`-aligned (arrays are zero-padded to tile multiples)."""
    dim_p = _round_up(dim, align)
    if dim_p <= target:
        return dim_p
    return max(align, (target // align) * align)


def _pad2(a, rows, cols):
    r, c = a.shape
    if r == rows and c == cols:
        return a
    return jnp.pad(a, ((0, rows - r), (0, cols - c)))


def _shrink_to_budget(tm, tn, tk, itemsize, has_bias, sub, budget):
    """Shrink tiles (K first, then the larger of M/N) until the double-buffered
    working set fits within `budget` bytes of VMEM."""
    def need(a, b, c):
        return (2 * (a * c + c * b) * itemsize      # double-buffered x / w tiles
                + 2 * a * b * itemsize              # double-buffered out tile
                + a * b * 4                         # f32 accumulator
                + (2 * b * itemsize if has_bias else 0))

    while need(tm, tn, tk) > budget and tk > 256:
        tk = max(256, ((tk // 2) // 128) * 128)
    while need(tm, tn, tk) > budget and (tm > 256 or tn > 256):
        if tn >= tm and tn > 256:
            tn = max(256, ((tn // 2) // 128) * 128)
        elif tm > 256:
            tm = max(256, ((tm // 2) // sub) * sub)
        else:
            break
    return tm, tn, tk


# ----------------------------- wrapper --------------------------------------

def column_parallel_linear(x, weight, bias=None, world_size=1, *,
                           tm=None, tn=None, tk=None):
    """Forward of ColumnParallelLinear given the full (unsharded) weight.

    x: (..., in_features); weight: (out_features, in_features) [PyTorch layout];
    bias: (out_features,) or None.  The world_size shards of the feature axis
    are reproduced by the K reduction grid axis (their summed partial products
    are the all_reduce).
    """
    *lead, in_features = x.shape
    out_features, w_in = weight.shape
    assert w_in == in_features, "weight must be (out_features, in_features)"
    assert in_features % world_size == 0, "in_features must be divisible by world_size"

    M = math.prod(lead) if lead else 1
    N, K = out_features, in_features

    if weight.dtype != x.dtype:
        weight = weight.astype(x.dtype)

    itemsize = jnp.dtype(x.dtype).itemsize
    sub = max(8, 32 // itemsize)      # dtype-aware sublane packing: 8/16/32
    lane = 128

    # Dtype-aware tile targets (512 f32 / 1024 bf16-and-narrower output tiles;
    # 1024-wide K steps, independent of the shard size).
    if tm is None:
        tm = 1024 if itemsize <= 2 else 512
    if tn is None:
        tn = 1024 if itemsize <= 2 else 512
    if tk is None:
        tk = 1024

    tm = _pick_tile(M, tm, sub)
    tn = _pick_tile(N, tn, lane)
    tk = _pick_tile(K, tk, lane)

    # v7x megacore: make sure there are >= 2 independent output tiles so both
    # TensorCores get work (when N allows it).
    if _cdiv(M, tm) * _cdiv(N, tn) < 2 and N > lane:
        tn = min(tn, _round_up(_cdiv(N, 2), lane))

    # Per-generation VMEM budget (64 MiB on v7x, 128 MiB on v5e/v6e).
    try:
        cap = int(pltpu.get_tpu_info().vmem_capacity_bytes)
    except Exception:  # pragma: no cover - conservative fallback
        cap = 64 * 2 ** 20
    budget = max(24 * 2 ** 20, int(0.55 * cap))
    tm, tn, tk = _shrink_to_budget(tm, tn, tk, itemsize, bias is not None, sub, budget)

    n_m, n_n, n_k = _cdiv(M, tm), _cdiv(N, tn), _cdiv(K, tk)
    Mp, Np, Kp = n_m * tm, n_n * tn, n_k * tk

    # Flatten + zero-pad to tile multiples (zeros contribute nothing to the
    # contraction; padded output rows/cols are sliced off).
    x2 = _pad2(x.reshape(M, K), Mp, Kp)
    # Pre-transpose the weight ONCE outside the kernel (amortized across calls)
    # -> standard (M,K)@(K,N) contraction, no per-K-step transpose in-kernel.
    wt = _pad2(weight.T, Kp, Np)

    vmem_needed = (2 * (tm * tk + tk * tn) * itemsize
                   + 2 * tm * tn * itemsize
                   + (tm * tn * 4 if n_k > 1 else 0)
                   + (2 * tn * itemsize if bias is not None else 0))
    vmem_limit = int(min(int(0.9 * cap), max(2 * vmem_needed, 32 * 2 ** 20)))

    out_shape = jax.ShapeDtypeStruct((Mp, Np), x.dtype)

    if n_k == 1:
        grid = (n_m, n_n)
        x_spec = pl.BlockSpec((tm, tk), lambda i, j: (i, 0))
        w_spec = pl.BlockSpec((tk, tn), lambda i, j: (0, j))
        o_spec = pl.BlockSpec((tm, tn), lambda i, j: (i, j))
        b_spec = pl.BlockSpec((1, tn), lambda i, j: (0, j))
        sems = ("parallel", "parallel")
        scratch = []
        kern = _mm_single_bias_kernel if bias is not None else _mm_single_nobias_kernel
    else:
        grid = (n_m, n_n, n_k)
        x_spec = pl.BlockSpec((tm, tk), lambda i, j, k: (i, k))
        w_spec = pl.BlockSpec((tk, tn), lambda i, j, k: (k, j))
        o_spec = pl.BlockSpec((tm, tn), lambda i, j, k: (i, j))
        b_spec = pl.BlockSpec((1, tn), lambda i, j, k: (0, j))
        sems = ("parallel", "parallel", "arbitrary")
        scratch = [pltpu.VMEM((tm, tn), jnp.float32)]
        kern = _mm_acc_bias_kernel if bias is not None else _mm_acc_nobias_kernel

    in_specs = [x_spec, w_spec]
    args = [x2, wt]
    if bias is not None:
        b2 = _pad2(bias.astype(x.dtype).reshape(1, N), 1, Np)
        in_specs.append(b_spec)
        args.append(b2)

    out = pl.pallas_call(
        kern,
        out_shape=out_shape,
        grid_spec=pltpu.PrefetchScalarGridSpec(
            num_scalar_prefetch=0,
            grid=grid,
            in_specs=in_specs,
            out_specs=o_spec,
            scratch_shapes=scratch),
        compiler_params=pltpu.CompilerParams(
            dimension_semantics=sems,
            vmem_limit_bytes=vmem_limit),
    )(*args)

    out = out[:M, :N]
    return out.reshape(*lead, out_features)


# ------------------------------ test ----------------------------------------

if __name__ == "__main__":
    key = jax.random.PRNGKey(0)
    k_x, k_w, k_b = jax.random.split(key, 3)

    batch, seq = 2, 8
    in_features, out_features = 512, 256
    world_size = 4  # simulated tensor-parallel degree (shards of input features)

    x = jax.random.normal(k_x, (batch, seq, in_features), dtype=jnp.float32)
    weight = jax.random.normal(k_w, (out_features, in_features), dtype=jnp.float32) * 0.05
    bias = jax.random.normal(k_b, (out_features,), dtype=jnp.float32) * 0.1

    y_ref = jnp.einsum("bsk,ok->bso", x, weight,
                       precision=jax.lax.Precision.HIGHEST) + bias

    # 1) With-bias path (single-K fast path: K fits one tile).
    y = jax.block_until_ready(column_parallel_linear(x, weight, bias, world_size))
    assert y.shape == (batch, seq, out_features)
    err1 = float(jnp.max(jnp.abs(y - y_ref)))
    assert jnp.allclose(y, y_ref, atol=2e-2, rtol=2e-2), f"max abs err {err1}"

    # 2) No-bias path, forcing the multi-K accumulator path (tk=128 -> 4 K steps).
    y2 = jax.block_until_ready(
        column_parallel_linear(x, weight, None, world_size, tk=128))
    y2_ref = y_ref - bias
    err2 = float(jnp.max(jnp.abs(y2 - y2_ref)))
    assert jnp.allclose(y2, y2_ref, atol=2e-2, rtol=2e-2), f"max abs err {err2}"

    # 3) bf16 inputs (bf16-native MXU path, dtype-aware tiling).
    xb, wb, bb = (x.astype(jnp.bfloat16), weight.astype(jnp.bfloat16),
                  bias.astype(jnp.bfloat16))
    y3 = jax.block_until_ready(column_parallel_linear(xb, wb, bb, world_size))
    y3_ref = (jnp.einsum("bsk,ok->bso", xb.astype(jnp.float32),
                         wb.astype(jnp.float32),
                         precision=jax.lax.Precision.HIGHEST)
              + bb.astype(jnp.float32))
    err3 = float(jnp.max(jnp.abs(y3.astype(jnp.float32) - y3_ref)))
    assert jnp.allclose(y3.astype(jnp.float32), y3_ref, atol=1e-1, rtol=1e-1), \
        f"max abs err {err3}"

    print("KERNEL_OK")
</pallas_src>

<mosaic_0001>
module attributes {stable_mosaic.version = 11 : i64} {
  func.func @_mm_single_bias_kernel(%arg0: i32, %arg1: i32, %arg2: memref<16x512xf32, #tpu.memory_space<vmem>>, %arg3: memref<512x128xf32, #tpu.memory_space<vmem>>, %arg4: memref<1x128xf32, #tpu.memory_space<vmem>>, %arg5: memref<16x128xf32, #tpu.memory_space<vmem>>) attributes {dimension_semantics = [#tpu.dimension_semantics<parallel>, #tpu.dimension_semantics<parallel>], iteration_bounds = array<i64: 1, 2>, scalar_prefetch = 0 : i64, scratch_operands = 0 : i64, tpu.core_type = #tpu.core_type<tc>, window_params = [{transform_indices = @transform_0, window_bounds = array<i64: 16, 512>}, {transform_indices = @transform_1, window_bounds = array<i64: 512, 128>}, {transform_indices = @transform_2, window_bounds = array<i64: 1, 128>}, {transform_indices = @transform_3, window_bounds = array<i64: 16, 128>}]} {
    %c0 = arith.constant 0 : index
    %c0_0 = arith.constant 0 : index
    %0 = vector.load %arg2[%c0, %c0_0] : memref<16x512xf32, #tpu.memory_space<vmem>>, vector<16x512xf32>
    %c0_1 = arith.constant 0 : index
    %c0_2 = arith.constant 0 : index
    %1 = vector.load %arg3[%c0_1, %c0_2] : memref<512x128xf32, #tpu.memory_space<vmem>>, vector<512x128xf32>
    %cst = arith.constant dense<0.000000e+00> : vector<16x128xf32>
    %2 = tpu.matmul %0, %1, %cst {dimension_numbers = #tpu.dot_dimension_numbers<[1], [0], [0], [1], [0, 0, 1, 1], [], []>} : vector<16x512xf32>, vector<512x128xf32>, vector<16x128xf32> -> vector<16x128xf32>
    %c0_3 = arith.constant 0 : index
    %c0_4 = arith.constant 0 : index
    %3 = vector.load %arg4[%c0_3, %c0_4] : memref<1x128xf32, #tpu.memory_space<vmem>>, vector<1x128xf32>
    %4 = vector.broadcast %3 : vector<1x128xf32> to vector<16x128xf32>
    %5 = arith.addf %2, %4 : vector<16x128xf32>
    %c0_5 = arith.constant 0 : index
    %c0_6 = arith.constant 0 : index
    %6 = vector.load %arg5[%c0_5, %c0_6] : memref<16x128xf32, #tpu.memory_space<vmem>>, vector<16x128xf32>
    tpu.vector_store %arg5[%c0_5, %c0_6], %5 {strides = array<i32>} : memref<16x128xf32, #tpu.memory_space<vmem>>, vector<16x128xf32>,
    return
  }
  func.func @transform_0(%arg0: i32, %arg1: i32) -> (i32, i32) {
    %c0_i32 = arith.constant 0 : i32
    %c0_i32_0 = arith.constant 0 : i32
    return %arg0, %c0_i32 : i32, i32
  }
  func.func @transform_1(%arg0: i32, %arg1: i32) -> (i32, i32) {
    %c0_i32 = arith.constant 0 : i32
    %c0_i32_0 = arith.constant 0 : i32
    return %c0_i32, %arg1 : i32, i32
  }
  func.func @transform_2(%arg0: i32, %arg1: i32) -> (i32, i32) {
    %c0_i32 = arith.constant 0 : i32
    %c0_i32_0 = arith.constant 0 : i32
    return %c0_i32, %arg1 : i32, i32
  }
  func.func @transform_3(%arg0: i32, %arg1: i32) -> (i32, i32) {
    %c0_i32 = arith.constant 0 : i32
    return %arg0, %arg1 : i32, i32
  }
}

</mosaic_0001>

<llo_original>
// kernel: tpu_custom_call.1
$region0: #{tpu_custom_call.1}
  #allocation0 [shape = 'u32[]', space=smem, size = 0x4, offset = 0x4, fixed_abs, tag = 'smem constant byte address 0x4 - core index']
  #allocation1 [shape = 'u32[144,128]{1,0:T(1,128)}', space=vmem, size = 0x12000, scoped, tag = 'internal scratch']
  %s0 = inlined_call_operand.hbm [shape: f32[16,512], index: 0, kind: input, shape index: {}]
  %s1 = inlined_call_operand.hbm [shape: f32[512,256], index: 1, kind: input, shape index: {}]
  %s2 = inlined_call_operand.vmem [shape: f32[1,256], index: 2, kind: input, shape index: {}]
  %s3 = inlined_call_operand.hbm [shape: f32[16,256], index: 3, kind: output, shape index: {}]
  %s4 = sld [smem:[#allocation0]]
  $region53: #{tpu_custom_call.1} parent=0
    _
  %s6 = ssub.s32 1, %s4
  %s7 = scalar_select 0, %s6, %s4
  $region1: #{tpu_custom_call.1} parent=0
    #allocation2 [shape = 'u8[32768]{0}', space=vmem, size = 0x8000, scoped, tag = 'input window, operand 0, single buffered']
    #allocation3 [shape = 's32[2]{0}', space=sflag, size = 0x8, scoped, tag = 'scoped memory for tpu_custom_call.1']
    #allocation4 [shape = 's32[2]{0}', space=sflag, size = 0x8, scoped, tag = 'scoped memory for tpu_custom_call.1']
    #allocation5 [shape = 'u8[524288]{0}', space=vmem, size = 0x80000, scoped, tag = 'input window, operand 1']
    #allocation6 [shape = 's32[2]{0}', space=sflag, size = 0x8, scoped, tag = 'scoped memory for tpu_custom_call.1']
    #allocation7 [shape = 'u8[16384]{0}', space=vmem, size = 0x4000, scoped, tag = 'output window, operand 0']
    %8 = vsyncpa [#allocation3], 0
    %9 = vsyncpa [#allocation6], 0
    %s10 = scalar_lea.sflag [#allocation6], 1
    %11 = vsyncpa %s10, 0
    %12 = vsyncpa [#allocation4], 0
    %s13 = scalar_lea.sflag [#allocation4], 1
    %14 = vsyncpa %s13, 0
    loop: start=0, step=1, limit=4
    $region2: #{tpu_custom_call.1} parent=1 // loop_pre_header
      _
    $region3: #{tpu_custom_call.1} parent=1 // loop_header
      %s16 = sphi 0, %s20
      %p17 = scmp.ge.s32.totalorder %s16, 4
      %s23 = sphi 0, %s35
      %s24 = sphi 0, %s31
      %s25 = sphi 0, %s23
      %s26 = sphi 0, %s24
      %s27 = sphi 0, %s25
      %s28 = sphi 0, %s26
      %s38 = sphi 0, %s40
      %s41 = sphi 0, %s38
      %s42 = sphi 0, %s41
      %s58 = sphi 0, %s42
      %s64 = sphi 0, %s66
      %s67 = sphi 0, %s64
      %s68 = sphi 0, %s67
      %s84 = sphi 0, %s68
      %s90 = sphi 0, %s92
      %s93 = sphi 0, %s90
      %s94 = sphi 0, %s93
      %s110 = sphi 0, %s94
      %s118 = sphi 0, %s120
      %s121 = sphi 0, %s118
      %s122 = sphi 0, %s121
      %s138 = sphi 0, %s122
    $region4: #{tpu_custom_call.1} parent=1 // loop_header_branch
      %19 = sbr.rel (%p17) target = $region8
    $region5: #{tpu_custom_call.1} parent=1 // loop_body
      %s21 = ssub.s32 %s16, 1
      %s22 = ssub.s32 %s16, 2
      %s29 = sadd.s32 1, %s24
      %p30 = scmp.ge.s32.totalorder %s29, 2
      %s31 = scalar_select %p30, 0, %s29
      %s32 = sadd.s32 1, %s23
      %s33 = scalar_select %p30, %s32, %s23
      %p34 = scmp.ge.s32.totalorder %s33, 1
      %s35 = scalar_select %p34, 0, %s33
      %s36 = ssub.s32 %s23, %s35
      %p37 = scmp.eq.s32.totalorder %s36, 0
      %s39 = sadd.s32 %s38, 1
      %s40 = scalar_select %p37, %s38, %s39
      %p43 = pneg %p37
      %p44 = scmp.eq.s32.totalorder %s16, 1
      %p45 = por %p43, %p44
      %p46 = scmp.ne.s32.totalorder %s38, %s41
      %p47 = scmp.eq.s32.totalorder %s16, 0
      %p48 = por %p46, %p47
      %p49 = scmp.ne.s32.totalorder %s38, %s41
      %p50 = scmp.eq.s32.totalorder %s21, 1
      %p51 = por %p49, %p50
      %p52 = scmp.ne.s32.totalorder %s41, %s42
      %p53 = scmp.eq.s32.totalorder %s21, 0
      %p54 = por %p52, %p53
      %p55 = scmp.ne.s32.totalorder %s41, %s42
      %p56 = scmp.eq.s32.totalorder %s22, 1
      %p57 = por %p55, %p56
      %p59 = scmp.ne.s32.totalorder %s42, %s58
      %p60 = scmp.eq.s32.totalorder %s22, 0
      %p61 = por %p59, %p60
      %s62 = ssub.s32 %s24, %s31
      %p63 = scmp.eq.s32.totalorder %s62, 0
      %s65 = sadd.s32 %s64, 1
      %s66 = scalar_select %p63, %s64, %s65
      %p69 = pneg %p63
      %p70 = scmp.eq.s32.totalorder %s16, 1
      %p71 = por %p69, %p70
      %p72 = scmp.ne.s32.totalorder %s64, %s67
      %p73 = scmp.eq.s32.totalorder %s16, 0
      %p74 = por %p72, %p73
      %p75 = scmp.ne.s32.totalorder %s64, %s67
      %p76 = scmp.eq.s32.totalorder %s21, 1
      %p77 = por %p75, %p76
      %p78 = scmp.ne.s32.totalorder %s67, %s68
      %p79 = scmp.eq.s32.totalorder %s21, 0
      %p80 = por %p78, %p79
      %p81 = scmp.ne.s32.totalorder %s67, %s68
      %p82 = scmp.eq.s32.totalorder %s22, 1
      %p83 = por %p81, %p82
      %p85 = scmp.ne.s32.totalorder %s68, %s84
      %p86 = scmp.eq.s32.totalorder %s22, 0
      %p87 = por %p85, %p86
      %s88 = ssub.s32 %s24, %s31
      %p89 = scmp.eq.s32.totalorder %s88, 0
      %s91 = sadd.s32 %s90, 1
      %s92 = scalar_select %p89, %s90, %s91
      %p95 = pneg %p89
      %p96 = scmp.eq.s32.totalorder %s16, 1
      %p97 = por %p95, %p96
      %p98 = scmp.ne.s32.totalorder %s90, %s93
      %p99 = scmp.eq.s32.totalorder %s16, 0
      %p100 = por %p98, %p99
      %p101 = scmp.ne.s32.totalorder %s90, %s93
      %p102 = scmp.eq.s32.totalorder %s21, 1
      %p103 = por %p101, %p102
      %p104 = scmp.ne.s32.totalorder %s93, %s94
      %p105 = scmp.eq.s32.totalorder %s21, 0
      %p106 = por %p104, %p105
      %p107 = scmp.ne.s32.totalorder %s93, %s94
      %p108 = scmp.eq.s32.totalorder %s22, 1
      %p109 = por %p107, %p108
      %p111 = scmp.ne.s32.totalorder %s94, %s110
      %p112 = scmp.eq.s32.totalorder %s22, 0
      %p113 = por %p111, %p112
      %s114 = ssub.s32 %s23, %s35
      %s115 = ssub.s32 %s24, %s31
      %s116 = sor.u32 %s114, %s115
      %p117 = scmp.eq.s32.totalorder %s116, 0
      %s119 = sadd.s32 %s118, 1
      %s120 = scalar_select %p117, %s118, %s119
      %p123 = pneg %p117
      %p124 = scmp.eq.s32.totalorder %s16, 1
      %p125 = por %p123, %p124
      %p126 = scmp.ne.s32.totalorder %s118, %s121
      %p127 = scmp.eq.s32.totalorder %s16, 0
      %p128 = por %p126, %p127
      %p129 = scmp.ne.s32.totalorder %s118, %s121
      %p130 = scmp.eq.s32.totalorder %s21, 1
      %p131 = por %p129, %p130
      %p132 = scmp.ne.s32.totalorder %s121, %s122
      %p133 = scmp.eq.s32.totalorder %s21, 0
      %p134 = por %p132, %p133
      %p135 = scmp.ne.s32.totalorder %s121, %s122
      %p136 = scmp.eq.s32.totalorder %s22, 1
      %p137 = por %p135, %p136
      %p139 = scmp.ne.s32.totalorder %s122, %s138
      %p140 = scmp.eq.s32.totalorder %s22, 0
      %p141 = por %p139, %p140
      %p142 = scmp.le.s32.totalorder 1, %s16
      %p143 = scmp.lt.s32.totalorder %s16, 3
      %p144 = pnand %p142, %p143
      %p145 = pneg %p144
      // Predicated region
      $region9: #{tpu_custom_call.1} parent=5 // pred_check
        _
      $region10: #{tpu_custom_call.1} parent=5 // pred_check_branch
        %147 = sbr.rel (%p144) target = $region12
      $region11: #{tpu_custom_call.1} parent=5 // pred_region
        %s148 = ssub.s32 %s16, 1
        // Predicated region
        $region13: #{tpu_custom_call.1} parent=11 // pred_check
          %p149 = pneg %p54
        $region14: #{tpu_custom_call.1} parent=11 // pred_check_branch
          %151 = sbr.rel (%p149) target = $region16
        $region15: #{tpu_custom_call.1} parent=11 // pred_region
          %s152 = smul.u32 2, %s25
          %s154 = ssub.s32 1024, 1024
          %155 = vsyncadd [#allocation3], %s154
          %s156 = smul.addr %s152, 4
          %s157 = smul.addr %s156, 128
          %s158 = scalar_lea.hbm %s0, %s157
          %s159 = sshll.u32 [#allocation2], 4
          %s160 = int_to_ptr.vmem [resolvable:$true] %s159
          %165 = dma.hbm_to_vmem [thread:$0]  %s158, 1024, %s160, [#allocation3], 512, 512, 32
        $region16: #{tpu_custom_call.1} parent=11 // pred_fallthru
          _
      $region12: #{tpu_custom_call.1} parent=5 // pred_fallthru
        _
      %p166 = scmp.lt.s32.totalorder %s16, 2
      // Predicated region
      $region17: #{tpu_custom_call.1} parent=5 // pred_check
        %p167 = pneg %p166
      $region18: #{tpu_custom_call.1} parent=5 // pred_check_branch
        %169 = sbr.rel (%p167) target = $region20
      $region19: #{tpu_custom_call.1} parent=5 // pred_region
        // Predicated region
        $region21: #{tpu_custom_call.1} parent=19 // pred_check
          %p170 = pneg %p74
        $region22: #{tpu_custom_call.1} parent=19 // pred_check_branch
          %172 = sbr.rel (%p170) target = $region24
        $region23: #{tpu_custom_call.1} parent=19 // pred_region
          %s173 = sand.u32 %s64, 1
          %s174 = scalar_lea.sflag [#allocation6], %s173
          %s175 = sand.u32 %s64, 1
          %s176 = smul.addr %s175, 512
          %s177 = scalar_lea.vmem [#allocation5], %s176
          %s179 = ssub.s32 8192, 8192
          %180 = vsyncadd %s174, %s179
          %s181 = smul.addr %s24, 128
          %s182 = scalar_lea.hbm %s1, %s181
          %s183 = sshll.u32 %s177, 4
          %s184 = int_to_ptr.vmem [resolvable:$true] %s183
          %189 = dma.hbm_to_vmem [thread:$0]  %s182, 8192, %s184, %s174, 256, 128, 8
        $region24: #{tpu_custom_call.1} parent=19 // pred_fallthru
          _
        // Predicated region
        $region25: #{tpu_custom_call.1} parent=19 // pred_check
          %p190 = pneg %p100
        $region26: #{tpu_custom_call.1} parent=19 // pred_check_branch
          %192 = sbr.rel (%p190) target = $region28
        $region27: #{tpu_custom_call.1} parent=19 // pred_region
          %p193 = scmp.lt.s32.totalorder %s24, 1
          %s194 = scalar_select %p193, %s24, 1
          %s195 = scalar_lea.vmem %s2, %s194
        $region28: #{tpu_custom_call.1} parent=19 // pred_fallthru
          _
      $region20: #{tpu_custom_call.1} parent=5 // pred_fallthru
        _
      %p196 = scmp.le.s32.totalorder 1, %s16
      %p197 = scmp.lt.s32.totalorder %s16, 3
      %p198 = pnand %p196, %p197
      %p199 = pneg %p198
      // Predicated region
      $region29: #{tpu_custom_call.1} parent=5 // pred_check
        _
      $region30: #{tpu_custom_call.1} parent=5 // pred_check_branch
        %201 = sbr.rel (%p198) target = $region32
      $region31: #{tpu_custom_call.1} parent=5 // pred_region
        %s202 = ssub.s32 %s16, 1
        // Predicated region
        $region33: #{tpu_custom_call.1} parent=31 // pred_check
          %p203 = pneg %p54
        $region34: #{tpu_custom_call.1} parent=31 // pred_check_branch
          %205 = sbr.rel (%p203) target = $region36
        $region35: #{tpu_custom_call.1} parent=31 // pred_region
          %206 = dma.done [#allocation3], 1024
        $region36: #{tpu_custom_call.1} parent=31 // pred_fallthru
          _
        %s207 = sand.u32 %s67, 1
        %s208 = scalar_lea.sflag [#allocation6], %s207
        %s209 = sand.u32 %s67, 1
        %s210 = smul.addr %s209, 512
        %s211 = scalar_lea.vmem [#allocation5], %s210
        // Predicated region
        $region37: #{tpu_custom_call.1} parent=31 // pred_check
          %p212 = pneg %p80
        $region38: #{tpu_custom_call.1} parent=31 // pred_check_branch
          %214 = sbr.rel (%p212) target = $region40
        $region39: #{tpu_custom_call.1} parent=31 // pred_region
          %215 = dma.done %s208, 8192
        $region40: #{tpu_custom_call.1} parent=31 // pred_fallthru
          _
        %p216 = pneg %p54
        %p217 = pneg %p51
        %s218 = sand.u32 %s67, 1
        %s219 = scalar_lea.sflag [#allocation6], %s218
        %s220 = sand.u32 %s67, 1
        %s221 = smul.addr %s220, 512
        %s222 = scalar_lea.vmem [#allocation5], %s221
        %p223 = pneg %p80
        %p224 = pneg %p77
        %p225 = scmp.lt.s32.totalorder %s26, 1
        %s226 = scalar_select %p225, %s26, 1
        %s227 = scalar_lea.vmem %s2, %s226
        %p228 = pneg %p106
        %p229 = pneg %p103
        %p230 = pneg %p134
        %p231 = pneg %p131
        %s232 = sand.u32 %s121, 1
        %s233 = scalar_lea.sflag [#allocation4], %s232
        %s234 = sand.u32 %s121, 1
        %s235 = smul.addr %s234, 16
        %s236 = scalar_lea.vmem [#allocation7], %s235
        %s237 = smul.u32 2, %s25
        %p238 = scmp.lt.s32.totalorder %s26, 1
        %s239 = scalar_select %p238, %s26, 1
        %s240 = scalar_lea.vmem %s2, %s239
        %s241 = smul.u32 2, %s25
        %v242 = vld [vmem:[#allocation2] sm:$0xff]
        %v243 = vld [vmem:[#allocation2 + $0x8] sm:$0xff]
        %v244 = vld [vmem:[#allocation2 + $0x10] sm:$0xff]
        %v245 = vld [vmem:[#allocation2 + $0x18] sm:$0xff]
        %v246 = vld [vmem:[#allocation2 + $0x20] sm:$0xff]
        %v247 = vld [vmem:[#allocation2 + $0x28] sm:$0xff]
        %v248 = vld [vmem:[#allocation2 + $0x30] sm:$0xff]
        %v249 = vld [vmem:[#allocation2 + $0x38] sm:$0xff]
        %v250 = vld [vmem:[%s211] sm:$0xff]
        %v251 = vld [vmem:[%s211 + $0x8] sm:$0xff]
        %v252 = vld [vmem:[%s211 + $0x10] sm:$0xff]
        %v253 = vld [vmem:[%s211 + $0x18] sm:$0xff]
        %v254 = vld [vmem:[%s211 + $0x20] sm:$0xff]
        %v255 = vld [vmem:[%s211 + $0x28] sm:$0xff]
        %v256 = vld [vmem:[%s211 + $0x30] sm:$0xff]
        %v257 = vld [vmem:[%s211 + $0x38] sm:$0xff]
        %v258 = vld [vmem:[%s211 + $0x40] sm:$0xff]
        %v259 = vld [vmem:[%s211 + $0x48] sm:$0xff]
        %v260 = vld [vmem:[%s211 + $0x50] sm:$0xff]
        %v261 = vld [vmem:[%s211 + $0x58] sm:$0xff]
        %v262 = vld [vmem:[%s211 + $0x60] sm:$0xff]
        %v263 = vld [vmem:[%s211 + $0x68] sm:$0xff]
        %v264 = vld [vmem:[%s211 + $0x70] sm:$0xff]
        %v265 = vld [vmem:[%s211 + $0x78] sm:$0xff]
        %v266 = vld [vmem:[%s211 + $0x80] sm:$0xff]
        %v267 = vld [vmem:[%s211 + $0x88] sm:$0xff]
        %v268 = vld [vmem:[%s211 + $0x90] sm:$0xff]
        %v269 = vld [vmem:[%s211 + $0x98] sm:$0xff]
        %v270 = vld [vmem:[%s211 + $0xa0] sm:$0xff]
        %v271 = vld [vmem:[%s211 + $0xa8] sm:$0xff]
        %v272 = vld [vmem:[%s211 + $0xb0] sm:$0xff]
        %v273 = vld [vmem:[%s211 + $0xb8] sm:$0xff]
        %v274 = vld [vmem:[%s211 + $0xc0] sm:$0xff]
        %v275 = vld [vmem:[%s211 + $0xc8] sm:$0xff]
        %v276 = vld [vmem:[%s211 + $0xd0] sm:$0xff]
        %v277 = vld [vmem:[%s211 + $0xd8] sm:$0xff]
        %v278 = vld [vmem:[%s211 + $0xe0] sm:$0xff]
        %v279 = vld [vmem:[%s211 + $0xe8] sm:$0xff]
        %v280 = vld [vmem:[%s211 + $0xf0] sm:$0xff]
        %v281 = vld [vmem:[%s211 + $0xf8] sm:$0xff]
        %v282 = vld [vmem:[%s211 + $0x100] sm:$0xff]
        %v283 = vld [vmem:[%s211 + $0x108] sm:$0xff]
        %v284 = vld [vmem:[%s211 + $0x110] sm:$0xff]
        %v285 = vld [vmem:[%s211 + $0x118] sm:$0xff]
        %v286 = vld [vmem:[%s211 + $0x120] sm:$0xff]
        %v287 = vld [vmem:[%s211 + $0x128] sm:$0xff]
        %v288 = vld [vmem:[%s211 + $0x130] sm:$0xff]
        %v289 = vld [vmem:[%s211 + $0x138] sm:$0xff]
        %v290 = vld [vmem:[%s211 + $0x140] sm:$0xff]
        %v291 = vld [vmem:[%s211 + $0x148] sm:$0xff]
        %v292 = vld [vmem:[%s211 + $0x150] sm:$0xff]
        %v293 = vld [vmem:[%s211 + $0x158] sm:$0xff]
        %v294 = vld [vmem:[%s211 + $0x160] sm:$0xff]
        %v295 = vld [vmem:[%s211 + $0x168] sm:$0xff]
        %v296 = vld [vmem:[%s211 + $0x170] sm:$0xff]
        %v297 = vld [vmem:[%s211 + $0x178] sm:$0xff]
        %v298 = vld [vmem:[%s211 + $0x180] sm:$0xff]
        %v299 = vld [vmem:[%s211 + $0x188] sm:$0xff]
        %v300 = vld [vmem:[%s211 + $0x190] sm:$0xff]
        %v301 = vld [vmem:[%s211 + $0x198] sm:$0xff]
        %v302 = vld [vmem:[%s211 + $0x1a0] sm:$0xff]
        %v303 = vld [vmem:[%s211 + $0x1a8] sm:$0xff]
        %v304 = vld [vmem:[%s211 + $0x1b0] sm:$0xff]
        %v305 = vld [vmem:[%s211 + $0x1b8] sm:$0xff]
        %v306 = vld [vmem:[%s211 + $0x1c0] sm:$0xff]
        %v307 = vld [vmem:[%s211 + $0x1c8] sm:$0xff]
        %v308 = vld [vmem:[%s211 + $0x1d0] sm:$0xff]
        %v309 = vld [vmem:[%s211 + $0x1d8] sm:$0xff]
        %v310 = vld [vmem:[%s211 + $0x1e0] sm:$0xff]
        %v311 = vld [vmem:[%s211 + $0x1e8] sm:$0xff]
        %v312 = vld [vmem:[%s211 + $0x1f0] sm:$0xff]
        %v313 = vld [vmem:[%s211 + $0x1f8] sm:$0xff]
        %v314 = vld [vmem:[%s240] sm:$0x1]
        %v316 = vlaneseq
        %v317 = vshrl.u32 %v316, 7
        %v318 = vsub.s32 0, %v317
        %v319 = vrot.slane %v314, %v318
        %321 = vmatprep.subr.mxu0 0.0
        %322 = vmatpush1.msra.mxu0 %v265
        %323 = vmatprep.subr.mxu0 0.0
        %324 = vmatpush1.msra.mxu0 %v264
        %325 = vmatprep.subr.mxu0 0.0
        %326 = vmatpush1.msra.mxu0 %v263
        %327 = vmatprep.subr.mxu0 0.0
        %328 = vmatpush1.msra.mxu0 %v262
        %329 = vmatprep.subr.mxu0 0.0
        %330 = vmatpush1.msra.mxu0 %v261
        %331 = vmatprep.subr.mxu0 0.0
        %332 = vmatpush1.msra.mxu0 %v260
        %333 = vmatprep.subr.mxu0 0.0
        %334 = vmatpush1.msra.mxu0 %v259
        %335 = vmatprep.subr.mxu0 0.0
        %336 = vmatpush1.msra.mxu0 %v258
        %337 = vmatprep.subr.mxu0 0.0
        %338 = vmatpush1.msra.mxu0 %v257
        %339 = vmatprep.subr.mxu0 0.0
        %340 = vmatpush1.msra.mxu0 %v256
        %341 = vmatprep.subr.mxu0 0.0
        %342 = vmatpush1.msra.mxu0 %v255
        %343 = vmatprep.subr.mxu0 0.0
        %344 = vmatpush1.msra.mxu0 %v254
        %345 = vmatprep.subr.mxu0 0.0
        %346 = vmatpush1.msra.mxu0 %v253
        %347 = vmatprep.subr.mxu0 0.0
        %348 = vmatpush1.msra.mxu0 %v252
        %349 = vmatprep.subr.mxu0 0.0
        %350 = vmatpush1.msra.mxu0 %v251
        %351 = vmatprep.subr.mxu0 0.0
        %352 = vmatpush1.msra.mxu0 %v250
        %353 = vmatprep.subr.mxu0 0.0
        %354 = vmatpush2.msra.mxu0 %v281
        %355 = vmatprep.subr.mxu0 0.0
        %356 = vmatpush2.msra.mxu0 %v280
        %357 = vmatprep.subr.mxu0 0.0
        %358 = vmatpush2.msra.mxu0 %v279
        %359 = vmatprep.subr.mxu0 0.0
        %360 = vmatpush2.msra.mxu0 %v278
        %361 = vmatprep.subr.mxu0 0.0
        %362 = vmatpush2.msra.mxu0 %v277
        %363 = vmatprep.subr.mxu0 0.0
        %364 = vmatpush2.msra.mxu0 %v276
        %365 = vmatprep.subr.mxu0 0.0
        %366 = vmatpush2.msra.mxu0 %v275
        %367 = vmatprep.subr.mxu0 0.0
        %368 = vmatpush2.msra.mxu0 %v274
        %369 = vmatprep.subr.mxu0 0.0
        %370 = vmatpush2.msra.mxu0 %v273
        %371 = vmatprep.subr.mxu0 0.0
        %372 = vmatpush2.msra.mxu0 %v272
        %373 = vmatprep.subr.mxu0 0.0
        %374 = vmatpush2.msra.mxu0 %v271
        %375 = vmatprep.subr.mxu0 0.0
        %376 = vmatpush2.msra.mxu0 %v270
        %377 = vmatprep.subr.mxu0 0.0
        %378 = vmatpush2.msra.mxu0 %v269
        %379 = vmatprep.subr.mxu0 0.0
        %380 = vmatpush2.msra.mxu0 %v268
        %381 = vmatprep.subr.mxu0 0.0
        %382 = vmatpush2.msra.mxu0 %v267
        %383 = vmatprep.subr.mxu0 0.0
        %384 = vmatpush2.msra.mxu0 %v266
        %385 = vmatprep.mubr.f32.mxu0 %v243
        %386 = vmatmul.mubr.f32.gmra.mxu0 %v242
        %v387 = vpop.f32.mrf.mxu0
        %v388 = vadd.f32 %v319, %v387
        %v389 = vpop.f32.mrf.mxu0
        %390 = vmatprep.mubr.f32.mxu0 %v247
        %391 = vmatmul.mubr.f32.gmra.mxu0 %v246
        %v392 = vpop.f32.mrf.mxu0
        %v393 = vadd.f32 %v319, %v392
        %v394 = vpop.f32.mrf.mxu0
        %395 = vdwg.mxu0
        %396 = vmatprep.subr.mxu0 0.0
        %397 = vmatpush1.msra.mxu0 %v297
        %398 = vmatprep.subr.mxu0 0.0
        %399 = vmatpush1.msra.mxu0 %v296
        %400 = vmatprep.subr.mxu0 0.0
        %401 = vmatpush1.msra.mxu0 %v295
        %402 = vmatprep.subr.mxu0 0.0
        %403 = vmatpush1.msra.mxu0 %v294
        %404 = vmatprep.subr.mxu0 0.0
        %405 = vmatpush1.msra.mxu0 %v293
        %406 = vmatprep.subr.mxu0 0.0
        %407 = vmatpush1.msra.mxu0 %v292
        %408 = vmatprep.subr.mxu0 0.0
        %409 = vmatpush1.msra.mxu0 %v291
        %410 = vmatprep.subr.mxu0 0.0
        %411 = vmatpush1.msra.mxu0 %v290
        %412 = vmatprep.subr.mxu0 0.0
        %413 = vmatpush1.msra.mxu0 %v289
        %414 = vmatprep.subr.mxu0 0.0
        %415 = vmatpush1.msra.mxu0 %v288
        %416 = vmatprep.subr.mxu0 0.0
        %417 = vmatpush1.msra.mxu0 %v287
        %418 = vmatprep.subr.mxu0 0.0
        %419 = vmatpush1.msra.mxu0 %v286
        %420 = vmatprep.subr.mxu0 0.0
        %421 = vmatpush1.msra.mxu0 %v285
        %422 = vmatprep.subr.mxu0 0.0
        %423 = vmatpush1.msra.mxu0 %v284
        %424 = vmatprep.subr.mxu0 0.0
        %425 = vmatpush1.msra.mxu0 %v283
        %426 = vmatprep.subr.mxu0 0.0
        %427 = vmatpush1.msra.mxu0 %v282
        %428 = vmatprep.subr.mxu0 0.0
        %429 = vmatpush2.msra.mxu0 %v313
        %430 = vmatprep.subr.mxu0 0.0
        %431 = vmatpush2.msra.mxu0 %v312
        %432 = vmatprep.subr.mxu0 0.0
        %433 = vmatpush2.msra.mxu0 %v311
        %434 = vmatprep.subr.mxu0 0.0
        %435 = vmatpush2.msra.mxu0 %v310
        %436 = vmatprep.subr.mxu0 0.0
        %437 = vmatpush2.msra.mxu0 %v309
        %438 = vmatprep.subr.mxu0 0.0
        %439 = vmatpush2.msra.mxu0 %v308
        %440 = vmatprep.subr.mxu0 0.0
        %441 = vmatpush2.msra.mxu0 %v307
        %442 = vmatprep.subr.mxu0 0.0
        %443 = vmatpush2.msra.mxu0 %v306
        %444 = vmatprep.subr.mxu0 0.0
        %445 = vmatpush2.msra.mxu0 %v305
        %446 = vmatprep.subr.mxu0 0.0
        %447 = vmatpush2.msra.mxu0 %v304
        %448 = vmatprep.subr.mxu0 0.0
        %449 = vmatpush2.msra.mxu0 %v303
        %450 = vmatprep.subr.mxu0 0.0
        %451 = vmatpush2.msra.mxu0 %v302
        %452 = vmatprep.subr.mxu0 0.0
        %453 = vmatpush2.msra.mxu0 %v301
        %454 = vmatprep.subr.mxu0 0.0
        %455 = vmatpush2.msra.mxu0 %v300
        %456 = vmatprep.subr.mxu0 0.0
        %457 = vmatpush2.msra.mxu0 %v299
        %458 = vmatprep.subr.mxu0 0.0
        %459 = vmatpush2.msra.mxu0 %v298
        %460 = vmatprep.mubr.f32.mxu0 %v245
        %461 = vmatmul.mubr.f32.gmra.mxu0 %v244
        %v462 = vpop.f32.mrf.mxu0
        %v463 = vadd.f32 %v388, %v462
        %v464 = vpop.f32.mrf.mxu0
        %465 = vmatprep.mubr.f32.mxu0 %v249
        %466 = vmatmul.mubr.f32.gmra.mxu0 %v248
        %v467 = vpop.f32.mrf.mxu0
        %v468 = vadd.f32 %v393, %v467
        %v469 = vpop.f32.mrf.mxu0
        %470 = vdwg.mxu0
        %471 = vst [vmem:[%s236] sm:$0xff] %v463
        %472 = vst [vmem:[%s236 + $0x8] sm:$0xff] %v468
        %s473 = sand.u32 %s121, 1
        %s474 = scalar_lea.sflag [#allocation4], %s473
        %s475 = sand.u32 %s121, 1
        %s476 = smul.addr %s475, 16
        %s477 = scalar_lea.vmem [#allocation7], %s476
        // Predicated region
        $region41: #{tpu_custom_call.1} parent=31 // pred_check
          %p478 = pneg %p131
        $region42: #{tpu_custom_call.1} parent=31 // pred_check_branch
          %480 = sbr.rel (%p478) target = $region44
        $region43: #{tpu_custom_call.1} parent=31 // pred_region
          %s481 = smul.u32 2, %s25
          %s483 = ssub.s32 256, 256
          %484 = vsyncadd %s474, %s483
          %s485 = smul.addr %s481, 2
          %s486 = sadd.s32 %s26, %s485
          %s487 = smul.addr %s486, 128
          %s488 = scalar_lea.hbm %s3, %s487
          %s489 = sshll.u32 %s477, 4
          %s490 = int_to_ptr.vmem [resolvable:$true] %s489
          %495 = dma.vmem_to_hbm [thread:$0]  %s490, 256, %s488, %s474, 128, 256, 8
        $region44: #{tpu_custom_call.1} parent=31 // pred_fallthru
          _
      $region32: #{tpu_custom_call.1} parent=5 // pred_fallthru
        _
      %p496 = scmp.le.s32.totalorder 2, %s16
      // Predicated region
      $region45: #{tpu_custom_call.1} parent=5 // pred_check
        %p497 = pneg %p496
      $region46: #{tpu_custom_call.1} parent=5 // pred_check_branch
        %499 = sbr.rel (%p497) target = $region48
      $region47: #{tpu_custom_call.1} parent=5 // pred_region
        %s500 = ssub.s32 %s16, 2
        // Predicated region
        $region49: #{tpu_custom_call.1} parent=47 // pred_check
          %p501 = pneg %p137
        $region50: #{tpu_custom_call.1} parent=47 // pred_check_branch
          %503 = sbr.rel (%p501) target = $region52
        $region51: #{tpu_custom_call.1} parent=47 // pred_region
          %s504 = sand.u32 %s122, 1
          %s505 = scalar_lea.sflag [#allocation4], %s504
          %s506 = sand.u32 %s122, 1
          %s507 = smul.addr %s506, 16
          %s508 = scalar_lea.vmem [#allocation7], %s507
          %509 = dma.done %s505, 256
        $region52: #{tpu_custom_call.1} parent=47 // pred_fallthru
          _
      $region48: #{tpu_custom_call.1} parent=5 // pred_fallthru
        _
    $region6: #{tpu_custom_call.1} parent=1 // loop_footer
      %s20 = sadd.s32 1, %s16
    $region7: #{tpu_custom_call.1} parent=1 // loop_footer_branch
      %15 = sbr.rel target = $region3
    $region8: #{tpu_custom_call.1} parent=1 // loop_exit
      _
    %510 = vsyncpa [#allocation3], 1
    %s511 = scalar_lea.sflag [#allocation3], 1
    %512 = vsyncpa %s511, 1
    %513 = vsyncpa [#allocation6], 1
    %s514 = scalar_lea.sflag [#allocation6], 1
    %515 = vsyncpa %s514, 1
    %516 = vsyncpa [#allocation4], 1
    %s517 = scalar_lea.sflag [#allocation4], 1
    %518 = vsyncpa %s517, 1

</llo_original>
